<compile_context>
chip_gen: v5e
topology: v5e:2x2
jax: 0.10.0
libtpu: 0.0.40
codegen_flags: <defaults>
</compile_context>

<pallas_src>
import math
import functools

import jax
import jax.numpy as jnp
from jax.experimental import pallas as pl
from jax.experimental.pallas import tpu as pltpu


def _round_up(v, m):
    return ((v + m - 1) // m) * m


def _largest_aligned_divisor(total, cap, aligns=(256, 128)):
    """Largest multiple of one of `aligns` (tried in order) that divides
    `total` and is <= cap.  Returns None if nothing fits."""
    cap = min(cap, total)
    for align in aligns:
        t = cap - (cap % align)
        while t >= align:
            if total % t == 0:
                return t
            t -= align
    return None


def _vmem_capacity_bytes():
    try:
        v = int(pltpu.get_tpu_info().vmem_capacity_bytes)
        if v > 0:
            return v
    except Exception:
        pass
    return 64 << 20          # conservative: v7x has 64 MiB per TensorCore


def _num_tensorcores():
    # Best-effort; used only to pick grid[0] >= num_cores for small M.
    try:
        info = pltpu.get_tpu_info()
        for attr in ("num_cores", "core_count", "num_tensorcores"):
            v = getattr(info, attr, None)
            if isinstance(v, int) and v > 0:
                return min(v, 2)
    except Exception:
        pass
    try:
        d = jax.devices()[0]
        for attr in ("num_cores", "core_count"):
            v = getattr(d, attr, None)
            if isinstance(v, int) and v > 0:
                return min(v, 2)
    except Exception:
        pass
    return 1


def _mlp_kernel(x_ref, w1_ref, b1_ref, w2_ref, b2_ref, o_ref, acc_ref,
                *, approximate_gelu):
    # x_ref  : (tile_m, C_in_p)        VMEM (resident across j, k)
    # w1_ref : (C_in_p, tile_k)        VMEM (streamed hidden slice of W1)
    # b1_ref : (1, tile_k)      f32    VMEM
    # w2_ref : (tile_k, tile_n)        VMEM (streamed hidden slice of W2)
    # b2_ref : (1, tile_n)      f32    VMEM
    # o_ref  : (tile_m, tile_n)        VMEM (same block across k)
    # acc_ref: (tile_m, tile_n) f32    VMEM scratch accumulator
    k = pl.program_id(2)

    @pl.when(k == 0)
    def _():
        # Fold the fc2 bias into the accumulator init (no epilogue add).
        acc_ref[...] = jnp.broadcast_to(b2_ref[...], acc_ref.shape)

    # fc1 for this hidden slice; bf16 x bf16 -> f32 when the wrapper pre-cast
    # the weights (several x the f32xf32 MXU rate).
    h = jnp.dot(x_ref[...].astype(w1_ref.dtype), w1_ref[...],
                preferred_element_type=jnp.float32)
    h = h + b1_ref[...]

    if approximate_gelu:
        # tanh form runs on the EUP slot (overlaps MXU/VALU work).
        c = jnp.float32(math.sqrt(2.0 / math.pi))
        h = 0.5 * h * (1.0 + jnp.tanh(c * (h + 0.044715 * h * h * h)))
    else:
        # exact erf matches torch.nn.GELU() default semantics.
        inv_sqrt2 = jnp.float32(1.0 / math.sqrt(2.0))
        h = 0.5 * h * (1.0 + jax.lax.erf(h * inv_sqrt2))

    # fc2 partial product for this hidden slice, accumulated in f32.
    acc_ref[...] += jnp.dot(h.astype(w2_ref.dtype), w2_ref[...],
                            preferred_element_type=jnp.float32)

    @pl.when(k == pl.num_programs(2) - 1)
    def _():
        o_ref[...] = acc_ref[...].astype(o_ref.dtype)


def mlp_pallas(x, w1, b1, w2, b2, *, tile_m=None, tile_k=None, tile_n=None,
               approximate_gelu=False, use_bf16_matmul=True,
               force_pallas=False):
    """x: (..., C_in); w1: (C_in, C_hid); b1: (C_hid,);
       w2: (C_hid, C_out); b2: (C_out,).  Returns (..., C_out)."""
    lead = x.shape[:-1]
    c_in = x.shape[-1]
    c_hid = w1.shape[1]
    c_out = w2.shape[1]
    M = int(math.prod(lead)) if lead else 1

    # ---- tiny-problem fallback: a padded 1x1-grid pallas call is dominated
    #      by per-step overhead; fused XLA wins there. ------------------------
    if not force_pallas and 2 * M * c_hid * (c_in + c_out) < (1 << 21):
        h = jnp.dot(x, w1) + b1
        h = jax.nn.gelu(h, approximate=approximate_gelu)
        return (jnp.dot(h, w2) + b2).astype(x.dtype)

    out_dtype = x.dtype

    # bf16 MXU path for f32 callers: pre-cast the weights in the wrapper so
    # the bf16 copies (not f32) are what gets streamed from HBM.
    if use_bf16_matmul and jnp.dtype(w1.dtype) == jnp.float32:
        w1 = w1.astype(jnp.bfloat16)
        w2 = w2.astype(jnp.bfloat16)

    # ---- lane-dense padding of feature dims (multiples of 128) --------------
    c_in_p = _round_up(c_in, 128)
    c_hid_p = _round_up(c_hid, 128)
    c_out_p = _round_up(c_out, 128)

    itm_x = jnp.dtype(x.dtype).itemsize
    itm_w = jnp.dtype(w1.dtype).itemsize
    itm_o = jnp.dtype(out_dtype).itemsize

    # ---- hidden (reduction) tile: prefer 256-aligned, must divide c_hid_p ---
    if tile_k is None:
        tile_k = _largest_aligned_divisor(c_hid_p, 512) or c_hid_p
    else:
        tile_k = _largest_aligned_divisor(c_hid_p, int(tile_k), (256, 128)) or c_hid_p

    # ---- output-feature tile: full width unless VMEM forces a split ---------
    if tile_n is None:
        tile_n = c_out_p
    else:
        tile_n = _largest_aligned_divisor(c_out_p, int(tile_n), (256, 128)) or c_out_p

    # ---- row tile: as large as VMEM allows.  Weights are re-streamed per row
    #      tile, so arithmetic intensity ~ 2*tile_m/itemsize flop per weight
    #      byte -> large tile_m keeps the kernel MXU-bound. -------------------
    if tile_m is None:
        tile_m = min(1024, _round_up(M, 16))
    tile_m = max(16, _round_up(int(tile_m), 16))

    # Megacore (v7x): make sure there are >= num_cores row tiles so the
    # "parallel" M axis actually uses both TensorCores for small/medium M.
    n_cores = _num_tensorcores()
    if n_cores > 1 and M > 16 * n_cores:
        grid_i = -(-M // tile_m)
        if grid_i < n_cores:
            tile_m = min(tile_m, _round_up(-(-M // n_cores), 16))

    # ---- hardware-aware VMEM budget & auto-shrink ---------------------------
    vmem_budget = int(_vmem_capacity_bytes() * 0.85)

    def working_set(tm, tk, tn):
        return (2 * tm * c_in_p * itm_x          # x tile (double buffered)
                + 2 * c_in_p * tk * itm_w        # W1 slice
                + 2 * tk * tn * itm_w            # W2 slice
                + 2 * tm * tn * itm_o            # out tile
                + tm * tn * 4                    # f32 accumulator scratch
                + tm * tk * 6                    # h (f32) + bf16 temp
                + 8 * (tk + tn) * 4)             # biases (tiny)

    for _ in range(64):
        if working_set(tile_m, tile_k, tile_n) <= vmem_budget:
            break
        if tile_k > 256:                         # cheapest: just more k steps
            tile_k = _largest_aligned_divisor(c_hid_p, tile_k - 128) or 128
        elif tile_n > 256:                       # keeps tile_m (intensity)
            tile_n = _largest_aligned_divisor(c_out_p, tile_n - 128) or 128
        elif tile_m > 256:
            tile_m = max(256, _round_up(tile_m // 2, 16))
        elif tile_k > 128:
            tile_k = 128
        elif tile_n > 128:
            tile_n = 128
        elif tile_m > 16:
            tile_m = max(16, _round_up(tile_m // 2, 16))
        else:
            break

    M_p = _round_up(M, tile_m)
    grid = (M_p // tile_m, c_out_p // tile_n, c_hid_p // tile_k)
    gi, gj, gk = grid

    # ---- zero-pad operands (zero rows/cols contribute exactly nothing) ------
    x2d = x.reshape(M, c_in)
    x2d = jnp.pad(x2d, ((0, M_p - M), (0, c_in_p - c_in)))
    w1p = jnp.pad(w1, ((0, c_in_p - c_in), (0, c_hid_p - c_hid)))
    b1p = jnp.pad(b1.astype(jnp.float32), (0, c_hid_p - c_hid)).reshape(1, c_hid_p)
    w2p = jnp.pad(w2, ((0, c_hid_p - c_hid), (0, c_out_p - c_out)))
    b2p = jnp.pad(b2.astype(jnp.float32), (0, c_out_p - c_out)).reshape(1, c_out_p)

    ws = working_set(tile_m, tile_k, tile_n)
    vmem_limit = int(min(vmem_budget, max(32 << 20, 2 * ws)))

    cost = pl.CostEstimate(
        flops=int(2 * M_p * c_in_p * c_hid_p * gj + 2 * M_p * c_hid_p * c_out_p),
        transcendentals=int(M_p * c_hid_p * gj),
        bytes_accessed=int(
            x2d.size * itm_x                     # x: resident across (j, k)
            + w1p.size * itm_w * gi * gj         # W1 re-streamed per (i, j)
            + b1p.size * 4 * gi * gj
            + w2p.size * itm_w * gi              # W2 re-streamed per i
            + b2p.size * 4 * gi
            + M_p * c_out_p * itm_o),            # output
    )

    kernel = functools.partial(_mlp_kernel, approximate_gelu=approximate_gelu)

    # TODO(synk): pipeline_mode=pl.Buffered(1) on the x / b2 specs (block index
    # constant across k) would free a bit more VMEM on v7x; left at the default
    # double-buffering for portability.
    out2d = pl.pallas_call(
        kernel,
        out_shape=jax.ShapeDtypeStruct((M_p, c_out_p), out_dtype),
        grid_spec=pltpu.PrefetchScalarGridSpec(
            num_scalar_prefetch=0,
            grid=grid,
            in_specs=[
                pl.BlockSpec((tile_m, c_in_p),  lambda i, j, k: (i, 0)),  # x
                pl.BlockSpec((c_in_p, tile_k),  lambda i, j, k: (0, k)),  # W1
                pl.BlockSpec((1, tile_k),       lambda i, j, k: (0, k)),  # b1
                pl.BlockSpec((tile_k, tile_n),  lambda i, j, k: (k, j)),  # W2
                pl.BlockSpec((1, tile_n),       lambda i, j, k: (0, j)),  # b2
            ],
            out_specs=pl.BlockSpec((tile_m, tile_n), lambda i, j, k: (i, j)),
            scratch_shapes=[pltpu.VMEM((tile_m, tile_n), jnp.float32)],
        ),
        compiler_params=pltpu.CompilerParams(
            dimension_semantics=("parallel", "parallel", "arbitrary"),
            vmem_limit_bytes=vmem_limit,
        ),
        cost_estimate=cost,
    )(x2d, w1p, b1p, w2p, b2p)

    out = out2d[:M, :c_out]
    return out.reshape(*lead, c_out)


def _init_params(key, in_features, hidden_features, out_features, dtype=jnp.float32):
    """Deterministic init mimicking nn.Linear defaults (uniform +-1/sqrt(fan_in));
       weights stored transposed relative to torch: (in, out)."""
    k1, k2, k3, k4 = jax.random.split(key, 4)
    lim1 = 1.0 / math.sqrt(in_features)
    lim2 = 1.0 / math.sqrt(hidden_features)
    w1 = jax.random.uniform(k1, (in_features, hidden_features), dtype, -lim1, lim1)
    b1 = jax.random.uniform(k2, (hidden_features,), dtype, -lim1, lim1)
    w2 = jax.random.uniform(k3, (hidden_features, out_features), dtype, -lim2, lim2)
    b2 = jax.random.uniform(k4, (out_features,), dtype, -lim2, lim2)
    return w1, b1, w2, b2


def _reference(x, w1, b1, w2, b2, compute_dtype=None):
    """Plain-JAX reference; compute_dtype=bf16 mirrors the kernel's bf16 path."""
    if compute_dtype is None:
        h = jnp.dot(x, w1) + b1
        h = jax.nn.gelu(h, approximate=False)
        return jnp.dot(h, w2) + b2
    h = jnp.dot(x.astype(compute_dtype), w1.astype(compute_dtype),
                preferred_element_type=jnp.float32) + b1.astype(jnp.float32)
    h = jax.nn.gelu(h, approximate=False)
    y = jnp.dot(h.astype(compute_dtype), w2.astype(compute_dtype),
                preferred_element_type=jnp.float32) + b2.astype(jnp.float32)
    return y.astype(x.dtype)


if __name__ == "__main__":
    key = jax.random.PRNGKey(0)
    kx1, kp1, kx2, kp2 = jax.random.split(key, 4)

    # --- tiny shapes consistent with the module: (B, N, C) tokens ------------
    B, N = 2, 8
    cin, chid, cout = 16, 32, 16
    x_s = jax.random.normal(kx1, (B, N, cin), jnp.float32)
    p_s = _init_params(kp1, cin, chid, cout)

    # default path: tiny problem -> plain-XLA fallback
    y0 = jax.block_until_ready(mlp_pallas(x_s, *p_s))
    assert y0.shape == (B, N, cout)
    assert jnp.allclose(y0, _reference(x_s, *p_s), atol=1e-5, rtol=1e-5)

    # forced Pallas path, exact f32 matmuls -> tight match to reference
    y1 = jax.block_until_ready(
        mlp_pallas(x_s, *p_s, force_pallas=True, use_bf16_matmul=False))
    assert y1.shape == (B, N, cout)
    assert jnp.allclose(y1, _reference(x_s, *p_s), atol=2e-5, rtol=2e-5), \
        float(jnp.max(jnp.abs(y1 - _reference(x_s, *p_s))))

    # --- ragged shapes exercising padding, k-streaming and the bf16 MXU path --
    B2, N2 = 2, 136
    cin2, chid2, cout2 = 48, 160, 48
    x_m = jax.random.normal(kx2, (B2, N2, cin2), jnp.float32)
    p_m = _init_params(kp2, cin2, chid2, cout2)

    y2 = jax.block_until_ready(mlp_pallas(x_m, *p_m, force_pallas=True))
    assert y2.shape == (B2, N2, cout2)
    y2_ref = _reference(x_m, *p_m, compute_dtype=jnp.bfloat16)
    err2 = float(jnp.max(jnp.abs(y2 - y2_ref)))
    assert err2 < 5e-3, err2

    print("KERNEL_OK")
</pallas_src>

<mosaic_0001>
module attributes {stable_mosaic.version = 11 : i64} {
  func.func @_mlp_kernel(%arg0: i32, %arg1: i32, %arg2: i32, %arg3: memref<16x128xf32, #tpu.memory_space<vmem>>, %arg4: memref<128x128xf32, #tpu.memory_space<vmem>>, %arg5: memref<1x128xf32, #tpu.memory_space<vmem>>, %arg6: memref<128x128xf32, #tpu.memory_space<vmem>>, %arg7: memref<1x128xf32, #tpu.memory_space<vmem>>, %arg8: memref<16x128xf32, #tpu.memory_space<vmem>>, %arg9: memref<16x128xf32, #tpu.memory_space<vmem>>) attributes {dimension_semantics = [#tpu.dimension_semantics<parallel>, #tpu.dimension_semantics<parallel>, #tpu.dimension_semantics<arbitrary>], iteration_bounds = array<i64: 1, 1, 1>, scalar_prefetch = 0 : i64, scratch_operands = 1 : i64, tpu.core_type = #tpu.core_type<tc>, window_params = [{transform_indices = @transform_0, window_bounds = array<i64: 16, 128>}, {transform_indices = @transform_1, window_bounds = array<i64: 128, 128>}, {transform_indices = @transform_2, window_bounds = array<i64: 1, 128>}, {transform_indices = @transform_3, window_bounds = array<i64: 128, 128>}, {transform_indices = @transform_4, window_bounds = array<i64: 1, 128>}, {transform_indices = @transform_5, window_bounds = array<i64: 16, 128>}]} {
    %c0_i32 = arith.constant 0 : i32
    %0 = arith.cmpi eq, %arg2, %c0_i32 : i32
    %1 = arith.extui %0 : i1 to i32
    %c0_i32_0 = arith.constant 0 : i32
    %2 = arith.cmpi ne, %1, %c0_i32_0 : i32
    scf.if %2 {
      %c0_18 = arith.constant 0 : index
      %c0_19 = arith.constant 0 : index
      %25 = vector.load %arg7[%c0_18, %c0_19] : memref<1x128xf32, #tpu.memory_space<vmem>>, vector<1x128xf32>
      %26 = vector.shape_cast %25 : vector<1x128xf32> to vector<1x128xf32>
      %27 = vector.broadcast %26 : vector<1x128xf32> to vector<16x128xf32>
      %c0_20 = arith.constant 0 : index
      %c0_21 = arith.constant 0 : index
      %28 = vector.load %arg9[%c0_20, %c0_21] : memref<16x128xf32, #tpu.memory_space<vmem>>, vector<16x128xf32>
      tpu.vector_store %arg9[%c0_20, %c0_21], %27 {strides = array<i32>} : memref<16x128xf32, #tpu.memory_space<vmem>>, vector<16x128xf32>,
    } else {
    }
    %c0 = arith.constant 0 : index
    %c0_1 = arith.constant 0 : index
    %3 = vector.load %arg3[%c0, %c0_1] : memref<16x128xf32, #tpu.memory_space<vmem>>, vector<16x128xf32>
    %c0_2 = arith.constant 0 : index
    %c0_3 = arith.constant 0 : index
    %4 = vector.load %arg4[%c0_2, %c0_3] : memref<128x128xf32, #tpu.memory_space<vmem>>, vector<128x128xf32>
    %cst = arith.constant dense<0.000000e+00> : vector<16x128xf32>
    %5 = tpu.matmul %3, %4, %cst {dimension_numbers = #tpu.dot_dimension_numbers<[1], [0], [0], [1], [0, 0, 1, 1], [], []>} : vector<16x128xf32>, vector<128x128xf32>, vector<16x128xf32> -> vector<16x128xf32>
    %c0_4 = arith.constant 0 : index
    %c0_5 = arith.constant 0 : index
    %6 = vector.load %arg5[%c0_4, %c0_5] : memref<1x128xf32, #tpu.memory_space<vmem>>, vector<1x128xf32>
    %7 = vector.broadcast %6 : vector<1x128xf32> to vector<16x128xf32>
    %8 = arith.addf %5, %7 : vector<16x128xf32>
    %cst_6 = arith.constant 5.000000e-01 : f32
    %9 = vector.broadcast %cst_6 : f32 to vector<16x128xf32>
    %10 = arith.mulf %9, %8 : vector<16x128xf32>
    %cst_7 = arith.constant 0.707106769 : f32
    %11 = vector.broadcast %cst_7 : f32 to vector<16x128xf32>
    %12 = arith.mulf %8, %11 : vector<16x128xf32>
    %13 = math.erf %12 : vector<16x128xf32>
    %cst_8 = arith.constant 1.000000e+00 : f32
    %14 = vector.broadcast %cst_8 : f32 to vector<16x128xf32>
    %15 = arith.addf %14, %13 : vector<16x128xf32>
    %16 = arith.mulf %10, %15 : vector<16x128xf32>
    %c0_9 = arith.constant 0 : index
    %c0_10 = arith.constant 0 : index
    %17 = vector.load %arg9[%c0_9, %c0_10] : memref<16x128xf32, #tpu.memory_space<vmem>>, vector<16x128xf32>
    %c0_11 = arith.constant 0 : index
    %c0_12 = arith.constant 0 : index
    %18 = vector.load %arg6[%c0_11, %c0_12] : memref<128x128xf32, #tpu.memory_space<vmem>>, vector<128x128xf32>
    %cst_13 = arith.constant dense<0.000000e+00> : vector<16x128xf32>
    %19 = tpu.matmul %16, %18, %cst_13 {dimension_numbers = #tpu.dot_dimension_numbers<[1], [0], [0], [1], [0, 0, 1, 1], [], []>} : vector<16x128xf32>, vector<128x128xf32>, vector<16x128xf32> -> vector<16x128xf32>
    %20 = arith.addf %17, %19 : vector<16x128xf32>
    %c0_14 = arith.constant 0 : index
    %c0_15 = arith.constant 0 : index
    %21 = vector.load %arg9[%c0_14, %c0_15] : memref<16x128xf32, #tpu.memory_space<vmem>>, vector<16x128xf32>
    tpu.vector_store %arg9[%c0_14, %c0_15], %20 {strides = array<i32>} : memref<16x128xf32, #tpu.memory_space<vmem>>, vector<16x128xf32>,
    %c0_i32_16 = arith.constant 0 : i32
    %22 = arith.cmpi eq, %arg2, %c0_i32_16 : i32
    %23 = arith.extui %22 : i1 to i32
    %c0_i32_17 = arith.constant 0 : i32
    %24 = arith.cmpi ne, %23, %c0_i32_17 : i32
    scf.if %24 {
      %c0_18 = arith.constant 0 : index
      %c0_19 = arith.constant 0 : index
      %25 = vector.load %arg9[%c0_18, %c0_19] : memref<16x128xf32, #tpu.memory_space<vmem>>, vector<16x128xf32>
      %c0_20 = arith.constant 0 : index
      %c0_21 = arith.constant 0 : index
      %26 = vector.load %arg8[%c0_20, %c0_21] : memref<16x128xf32, #tpu.memory_space<vmem>>, vector<16x128xf32>
      tpu.vector_store %arg8[%c0_20, %c0_21], %25 {strides = array<i32>} : memref<16x128xf32, #tpu.memory_space<vmem>>, vector<16x128xf32>,
    } else {
    }
    return
  }
  func.func @transform_0(%arg0: i32, %arg1: i32, %arg2: i32) -> (i32, i32) {
    %c0_i32 = arith.constant 0 : i32
    %c0_i32_0 = arith.constant 0 : i32
    return %arg0, %c0_i32 : i32, i32
  }
  func.func @transform_1(%arg0: i32, %arg1: i32, %arg2: i32) -> (i32, i32) {
    %c0_i32 = arith.constant 0 : i32
    %c0_i32_0 = arith.constant 0 : i32
    return %c0_i32, %arg2 : i32, i32
  }
  func.func @transform_2(%arg0: i32, %arg1: i32, %arg2: i32) -> (i32, i32) {
    %c0_i32 = arith.constant 0 : i32
    %c0_i32_0 = arith.constant 0 : i32
    return %c0_i32, %arg2 : i32, i32
  }
  func.func @transform_3(%arg0: i32, %arg1: i32, %arg2: i32) -> (i32, i32) {
    %c0_i32 = arith.constant 0 : i32
    return %arg2, %arg1 : i32, i32
  }
  func.func @transform_4(%arg0: i32, %arg1: i32, %arg2: i32) -> (i32, i32) {
    %c0_i32 = arith.constant 0 : i32
    %c0_i32_0 = arith.constant 0 : i32
    return %c0_i32, %arg1 : i32, i32
  }
  func.func @transform_5(%arg0: i32, %arg1: i32, %arg2: i32) -> (i32, i32) {
    %c0_i32 = arith.constant 0 : i32
    return %arg0, %arg1 : i32, i32
  }
}

</mosaic_0001>

<llo_original>
// kernel: tpu_custom_call.1
$region0: #{tpu_custom_call.1}
  #allocation0 [shape = 'u32[]', space=smem, size = 0x4, offset = 0x4, fixed_abs, tag = 'smem constant byte address 0x4 - core index']
  #allocation1 [shape = 'u32[72,128]{1,0:T(1,128)}', space=vmem, size = 0x9000, scoped, tag = 'internal scratch']
  #allocation2 [shape = 'f32[16,128]{1,0:T(8,128)}', space=vmem, size = 0x2000, scoped, tag = 'scratch operand']
  %s0 = inlined_call_operand.hbm [shape: f32[16,128], index: 0, kind: input, shape index: {}]
  %s1 = inlined_call_operand.hbm [shape: f32[128,128], index: 1, kind: input, shape index: {}]
  %s2 = inlined_call_operand.vmem [shape: f32[1,128], index: 2, kind: input, shape index: {}]
  %s3 = inlined_call_operand.hbm [shape: f32[128,128], index: 3, kind: input, shape index: {}]
  %s4 = inlined_call_operand.vmem [shape: f32[1,128], index: 4, kind: input, shape index: {}]
  %s5 = inlined_call_operand.hbm [shape: f32[16,128], index: 5, kind: output, shape index: {}]
  %s6 = sld [smem:[#allocation0]]
  $region50: #{tpu_custom_call.1} parent=0
    _
  %s8 = ssub.s32 1, %s6
  %s9 = scalar_select 0, %s8, %s6
  $region1: #{tpu_custom_call.1} parent=0
    #allocation3 [shape = 'u8[8192]{0}', space=vmem, size = 0x2000, scoped, tag = 'input window, operand 0, single buffered']
    #allocation4 [shape = 's32[1]{0}', space=sflag, size = 0x4, scoped, tag = 'scoped memory for tpu_custom_call.1']
    #allocation5 [shape = 's32[1]{0}', space=sflag, size = 0x4, scoped, tag = 'scoped memory for tpu_custom_call.1']
    #allocation6 [shape = 'u8[65536]{0}', space=vmem, size = 0x10000, scoped, tag = 'input window, operand 1, single buffered']
    #allocation7 [shape = 's32[1]{0}', space=sflag, size = 0x4, scoped, tag = 'scoped memory for tpu_custom_call.1']
    #allocation8 [shape = 'u8[65536]{0}', space=vmem, size = 0x10000, scoped, tag = 'input window, operand 3, single buffered']
    #allocation9 [shape = 'u8[8192]{0}', space=vmem, size = 0x2000, scoped, tag = 'output window, operand 0, single buffered']
    %10 = vsyncpa [#allocation4], 0
    %11 = vsyncpa [#allocation7], 0
    %12 = vsyncpa [#allocation5], 0
    // Predicated region
    $region2: #{tpu_custom_call.1} parent=1 // pred_check
      _
    $region3: #{tpu_custom_call.1} parent=1 // pred_check_branch
      %14 = sbr.rel (0) target = $region5
    $region4: #{tpu_custom_call.1} parent=1 // pred_region
      %16 = vsyncadd [#allocation4], 0
      %s17 = sshll.u32 %s0, 4
      %s18 = int_to_ptr.hbm [resolvable:$true] %s17
      %s19 = sshll.u32 [#allocation3], 4
      %s20 = int_to_ptr.vmem [resolvable:$true] %s19
      %25 = dma.hbm_to_vmem [thread:$0]  %s18, 256, %s20, [#allocation4], 128, 128, 8
    $region5: #{tpu_custom_call.1} parent=1 // pred_fallthru
      _
    // Predicated region
    $region6: #{tpu_custom_call.1} parent=1 // pred_check
      _
    $region7: #{tpu_custom_call.1} parent=1 // pred_check_branch
      %27 = sbr.rel (0) target = $region9
    $region8: #{tpu_custom_call.1} parent=1 // pred_region
      %29 = vsyncadd [#allocation7], 0
      %s30 = sshll.u32 %s1, 4
      %s31 = int_to_ptr.hbm [resolvable:$true] %s30
      %s32 = sshll.u32 [#allocation6], 4
      %s33 = int_to_ptr.vmem [resolvable:$true] %s32
      %38 = dma.hbm_to_vmem [thread:$0]  %s31, 2048, %s33, [#allocation7], 128, 128, 8
    $region9: #{tpu_custom_call.1} parent=1 // pred_fallthru
      _
    // Predicated region
    $region10: #{tpu_custom_call.1} parent=1 // pred_check
      _
    $region11: #{tpu_custom_call.1} parent=1 // pred_check_branch
      %40 = sbr.rel (0) target = $region13
    $region12: #{tpu_custom_call.1} parent=1 // pred_region
      _
    $region13: #{tpu_custom_call.1} parent=1 // pred_fallthru
      _
    // Predicated region
    $region14: #{tpu_custom_call.1} parent=1 // pred_check
      _
    $region15: #{tpu_custom_call.1} parent=1 // pred_check_branch
      %42 = sbr.rel (0) target = $region17
    $region16: #{tpu_custom_call.1} parent=1 // pred_region
      %44 = vsyncadd [#allocation7], 0
      %s45 = sshll.u32 %s3, 4
      %s46 = int_to_ptr.hbm [resolvable:$true] %s45
      %s47 = sshll.u32 [#allocation8], 4
      %s48 = int_to_ptr.vmem [resolvable:$true] %s47
      %53 = dma.hbm_to_vmem [thread:$0]  %s46, 2048, %s48, [#allocation7], 128, 128, 8
    $region17: #{tpu_custom_call.1} parent=1 // pred_fallthru
      _
    // Predicated region
    $region18: #{tpu_custom_call.1} parent=1 // pred_check
      _
    $region19: #{tpu_custom_call.1} parent=1 // pred_check_branch
      %55 = sbr.rel (0) target = $region21
    $region20: #{tpu_custom_call.1} parent=1 // pred_region
      _
    $region21: #{tpu_custom_call.1} parent=1 // pred_fallthru
      _
    // Predicated region
    $region22: #{tpu_custom_call.1} parent=1 // pred_check
      _
    $region23: #{tpu_custom_call.1} parent=1 // pred_check_branch
      %57 = sbr.rel (0) target = $region25
    $region24: #{tpu_custom_call.1} parent=1 // pred_region
      %59 = dma.done [#allocation4], 256
    $region25: #{tpu_custom_call.1} parent=1 // pred_fallthru
      _
    // Predicated region
    $region26: #{tpu_custom_call.1} parent=1 // pred_check
      _
    $region27: #{tpu_custom_call.1} parent=1 // pred_check_branch
      %61 = sbr.rel (0) target = $region29
    $region28: #{tpu_custom_call.1} parent=1 // pred_region
      %63 = dma.done [#allocation7], 2048
    $region29: #{tpu_custom_call.1} parent=1 // pred_fallthru
      _
    // Predicated region
    $region30: #{tpu_custom_call.1} parent=1 // pred_check
      _
    $region31: #{tpu_custom_call.1} parent=1 // pred_check_branch
      %65 = sbr.rel (0) target = $region33
    $region32: #{tpu_custom_call.1} parent=1 // pred_region
      %67 = dma.done [#allocation7], 2048
    $region33: #{tpu_custom_call.1} parent=1 // pred_fallthru
      _
    %p68 = scmp.eq.s32.totalorder 0, 0
    // Predicated region
    $region34: #{tpu_custom_call.1} parent=1 // pred_check
      %p69 = pneg %p68
    $region35: #{tpu_custom_call.1} parent=1 // pred_check_branch
      %71 = sbr.rel (%p69) target = $region37
    $region36: #{tpu_custom_call.1} parent=1 // pred_region
      %v72 = vld [vmem:[%s4] sm:$0x1]
      %v74 = vperm.slane %v72, 0
      %76 = vst [vmem:[#allocation2] sm:$0xff] %v74
      %77 = vst [vmem:[#allocation2 + $0x8] sm:$0xff] %v74
    $region37: #{tpu_custom_call.1} parent=1 // pred_fallthru
      _
    %v78 = vld [vmem:[#allocation3] sm:$0xff]
    %v79 = vld [vmem:[#allocation3 + $0x8] sm:$0xff]
    %v80 = vld [vmem:[#allocation6] sm:$0xff]
    %v81 = vld [vmem:[#allocation6 + $0x8] sm:$0xff]
    %v82 = vld [vmem:[#allocation6 + $0x10] sm:$0xff]
    %v83 = vld [vmem:[#allocation6 + $0x18] sm:$0xff]
    %v84 = vld [vmem:[#allocation6 + $0x20] sm:$0xff]
    %v85 = vld [vmem:[#allocation6 + $0x28] sm:$0xff]
    %v86 = vld [vmem:[#allocation6 + $0x30] sm:$0xff]
    %v87 = vld [vmem:[#allocation6 + $0x38] sm:$0xff]
    %v88 = vld [vmem:[#allocation6 + $0x40] sm:$0xff]
    %v89 = vld [vmem:[#allocation6 + $0x48] sm:$0xff]
    %v90 = vld [vmem:[#allocation6 + $0x50] sm:$0xff]
    %v91 = vld [vmem:[#allocation6 + $0x58] sm:$0xff]
    %v92 = vld [vmem:[#allocation6 + $0x60] sm:$0xff]
    %v93 = vld [vmem:[#allocation6 + $0x68] sm:$0xff]
    %v94 = vld [vmem:[#allocation6 + $0x70] sm:$0xff]
    %v95 = vld [vmem:[#allocation6 + $0x78] sm:$0xff]
    %v96 = vld [vmem:[%s2] sm:$0x1]
    %v98 = vperm.slane %v96, 0
    %100 = vmatpush.msra.mxu0 %v95
    %101 = vmatpush.msra.mxu0 %v94
    %102 = vmatpush.msra.mxu0 %v93
    %103 = vmatpush.msra.mxu0 %v92
    %104 = vmatpush.msra.mxu0 %v91
    %105 = vmatpush.msra.mxu0 %v90
    %106 = vmatpush.msra.mxu0 %v89
    %107 = vmatpush.msra.mxu0 %v88
    %108 = vmatpush.msra.mxu0 %v87
    %109 = vmatpush.msra.mxu0 %v86
    %110 = vmatpush.msra.mxu0 %v85
    %111 = vmatpush.msra.mxu0 %v84
    %112 = vmatpush.msra.mxu0 %v83
    %113 = vmatpush.msra.mxu0 %v82
    %114 = vmatpush.msra.mxu0 %v81
    %115 = vmatpush.msra.mxu0 %v80
    %116 = vmatmul.f32.gmra.mxu0 %v78
    %v117 = vpop.f32.mrf.mxu0
    %v118 = vadd.f32 %v98, %v117
    %119 = vmatmul.f32.gmra.mxu0 %v79
    %v120 = vpop.f32.mrf.mxu0
    %v121 = vadd.f32 %v98, %v120
    %122 = vdwg.mxu0
    %v123 = vmul.f32 %v118, 0.5
    %v124 = vmul.f32 %v121, 0.5
    %v125 = vmul.f32 %v118, 0.70710677
    %v126 = vmul.f32 %v121, 0.70710677
    %v127 = vmul.f32 %v125, %v125
    %v128 = vmin.f32 16.0, %v127
    %v129 = vmul.f32 %v128, 2.1237322e-06
    %v130 = vadd.f32 %v129, 0.00028619796
    %v131 = vmul.f32 %v128, %v130
    %v132 = vadd.f32 %v131, 0.0036580483
    %v133 = vmul.f32 %v128, %v132
    %v134 = vadd.f32 %v133, 0.05243302
    %v135 = vmul.f32 %v128, %v134
    %v136 = vadd.f32 %v135, 0.18741608
    %v137 = vmul.f32 %v128, %v136
    %v138 = vadd.f32 %v137, 1.1283791
    %v139 = vmul.f32 %v125, %v138
    %v140 = vmul.f32 %v128, 3.8918573e-05
    %v141 = vadd.f32 %v140, 0.001143296
    %v142 = vmul.f32 %v128, %v141
    %v143 = vadd.f32 %v142, 0.014752088
    %v144 = vmul.f32 %v128, %v143
    %v145 = vadd.f32 %v144, 0.112945676
    %v146 = vmul.f32 %v128, %v145
    %v147 = vadd.f32 %v146, 0.4994258
    %v148 = vmul.f32 %v128, %v147
    %v149 = vadd.f32 %v148, 1.0
    %v150 = vrcp.pop %v149
    %v151 = vmul.f32 %v149, %v150
    %v152 = vsub.f32 1.0, %v151
    %v153 = vmul.f32 %v150, %v152
    %v154 = vadd.f32 %v150, %v153
    %vm155 = vweird.f32 %v149
    %vm156 = vweird.f32 %v150
    %vm157 = vmor %vm155, %vm156
    %v158 = vsel %vm157, %v150, %v154
    %v159 = vand.u32 2147483647, %v149
    %vm160 = vcmp.eq.f32.partialorder %v159, 8.507059e+37
    %v161 = vand.u32 %v149, 2147483648
    %v162 = vor.u32 1.1754944e-38, %v161
    %v163 = vsel %vm160, %v162, %v158
    %v164 = vmul.f32 %v139, %v163
    %v165 = vmin.f32 %v164, 1.0
    %v166 = vmax.f32 %v165, -1.0
    %v167 = vmul.f32 %v126, %v126
    %v168 = vmin.f32 16.0, %v167
    %v169 = vmul.f32 %v168, 2.1237322e-06
    %v170 = vadd.f32 %v169, 0.00028619796
    %v171 = vmul.f32 %v168, %v170
    %v172 = vadd.f32 %v171, 0.0036580483
    %v173 = vmul.f32 %v168, %v172
    %v174 = vadd.f32 %v173, 0.05243302
    %v175 = vmul.f32 %v168, %v174
    %v176 = vadd.f32 %v175, 0.18741608
    %v177 = vmul.f32 %v168, %v176
    %v178 = vadd.f32 %v177, 1.1283791
    %v179 = vmul.f32 %v126, %v178
    %v180 = vmul.f32 %v168, 3.8918573e-05
    %v181 = vadd.f32 %v180, 0.001143296
    %v182 = vmul.f32 %v168, %v181
    %v183 = vadd.f32 %v182, 0.014752088
    %v184 = vmul.f32 %v168, %v183
    %v185 = vadd.f32 %v184, 0.112945676
    %v186 = vmul.f32 %v168, %v185
    %v187 = vadd.f32 %v186, 0.4994258
    %v188 = vmul.f32 %v168, %v187
    %v189 = vadd.f32 %v188, 1.0
    %v190 = vrcp.pop %v189
    %v191 = vmul.f32 %v189, %v190
    %v192 = vsub.f32 1.0, %v191
    %v193 = vmul.f32 %v190, %v192
    %v194 = vadd.f32 %v190, %v193
    %vm195 = vweird.f32 %v189
    %vm196 = vweird.f32 %v190
    %vm197 = vmor %vm195, %vm196
    %v198 = vsel %vm197, %v190, %v194
    %v199 = vand.u32 2147483647, %v189
    %vm200 = vcmp.eq.f32.partialorder %v199, 8.507059e+37
    %v201 = vand.u32 %v189, 2147483648
    %v202 = vor.u32 1.1754944e-38, %v201
    %v203 = vsel %vm200, %v202, %v198
    %v204 = vmul.f32 %v179, %v203
    %v205 = vmin.f32 %v204, 1.0
    %v206 = vmax.f32 %v205, -1.0
    %v207 = vadd.f32 %v166, 1.0
    %v208 = vadd.f32 %v206, 1.0
    %v209 = vmul.f32 %v123, %v207
    %v210 = vmul.f32 %v124, %v208
    %v211 = vld [vmem:[#allocation2] sm:$0xff]
    %v212 = vld [vmem:[#allocation2 + $0x8] sm:$0xff]
    %v213 = vld [vmem:[#allocation8] sm:$0xff]
    %v214 = vld [vmem:[#allocation8 + $0x8] sm:$0xff]
    %v215 = vld [vmem:[#allocation8 + $0x10] sm:$0xff]
    %v216 = vld [vmem:[#allocation8 + $0x18] sm:$0xff]
    %v217 = vld [vmem:[#allocation8 + $0x20] sm:$0xff]
    %v218 = vld [vmem:[#allocation8 + $0x28] sm:$0xff]
    %v219 = vld [vmem:[#allocation8 + $0x30] sm:$0xff]
    %v220 = vld [vmem:[#allocation8 + $0x38] sm:$0xff]
    %v221 = vld [vmem:[#allocation8 + $0x40] sm:$0xff]
    %v222 = vld [vmem:[#allocation8 + $0x48] sm:$0xff]
    %v223 = vld [vmem:[#allocation8 + $0x50] sm:$0xff]
    %v224 = vld [vmem:[#allocation8 + $0x58] sm:$0xff]
    %v225 = vld [vmem:[#allocation8 + $0x60] sm:$0xff]
    %v226 = vld [vmem:[#allocation8 + $0x68] sm:$0xff]
    %v227 = vld [vmem:[#allocation8 + $0x70] sm:$0xff]
    %v228 = vld [vmem:[#allocation8 + $0x78] sm:$0xff]
    %229 = vmatpush.msra.mxu0 %v228
    %230 = vmatpush.msra.mxu0 %v227
    %231 = vmatpush.msra.mxu0 %v226
    %232 = vmatpush.msra.mxu0 %v225
    %233 = vmatpush.msra.mxu0 %v224
    %234 = vmatpush.msra.mxu0 %v223
    %235 = vmatpush.msra.mxu0 %v222
    %236 = vmatpush.msra.mxu0 %v221
    %237 = vmatpush.msra.mxu0 %v220
    %238 = vmatpush.msra.mxu0 %v219
    %239 = vmatpush.msra.mxu0 %v218
    %240 = vmatpush.msra.mxu0 %v217
    %241 = vmatpush.msra.mxu0 %v216
    %242 = vmatpush.msra.mxu0 %v215
    %243 = vmatpush.msra.mxu0 %v214
    %244 = vmatpush.msra.mxu0 %v213
    %245 = vmatmul.f32.gmra.mxu0 %v209
    %v246 = vpop.f32.mrf.mxu0
    %v247 = vadd.f32 0.0, %v246
    %248 = vmatmul.f32.gmra.mxu0 %v210
    %v249 = vpop.f32.mrf.mxu0
    %v250 = vadd.f32 0.0, %v249
    %251 = vdwg.mxu0
    %v252 = vadd.f32 %v211, %v247
    %v253 = vadd.f32 %v212, %v250
    %254 = vst [vmem:[#allocation2] sm:$0xff] %v252
    %255 = vst [vmem:[#allocation2 + $0x8] sm:$0xff] %v253
    // Predicated region
    $region38: #{tpu_custom_call.1} parent=1 // pred_check
      %p256 = pneg %p68
    $region39: #{tpu_custom_call.1} parent=1 // pred_check_branch
      %258 = sbr.rel (%p256) target = $region41
    $region40: #{tpu_custom_call.1} parent=1 // pred_region
      %v259 = vld [vmem:[#allocation2] sm:$0xff]
      %v260 = vld [vmem:[#allocation2 + $0x8] sm:$0xff]
      %261 = vst [vmem:[#allocation9] sm:$0xff] %v259
      %262 = vst [vmem:[#allocation9 + $0x8] sm:$0xff] %v260
    $region41: #{tpu_custom_call.1} parent=1 // pred_fallthru
      _
    // Predicated region
    $region42: #{tpu_custom_call.1} parent=1 // pred_check
      _
    $region43: #{tpu_custom_call.1} parent=1 // pred_check_branch
      %264 = sbr.rel (0) target = $region45
    $region44: #{tpu_custom_call.1} parent=1 // pred_region
      %266 = vsyncadd [#allocation5], 0
      %s267 = sshll.u32 [#allocation9], 4
      %s268 = int_to_ptr.vmem [resolvable:$true] %s267
      %s269 = sshll.u32 %s5, 4
      %s270 = int_to_ptr.hbm [resolvable:$true] %s269
      %275 = dma.vmem_to_hbm [thread:$0]  %s268, 256, %s270, [#allocation5], 128, 128, 8
    $region45: #{tpu_custom_call.1} parent=1 // pred_fallthru
      _
    // Predicated region
    $region46: #{tpu_custom_call.1} parent=1 // pred_check
      _
    $region47: #{tpu_custom_call.1} parent=1 // pred_check_branch
      %277 = sbr.rel (0) target = $region49
    $region48: #{tpu_custom_call.1} parent=1 // pred_region
      %279 = dma.done [#allocation5], 256
    $region49: #{tpu_custom_call.1} parent=1 // pred_fallthru
      _
    %280 = vsyncpa [#allocation4], 1
    %281 = vsyncpa [#allocation7], 1
    %282 = vsyncpa [#allocation5], 1

</llo_original>
